<compile_context>
chip_gen: v5e
topology: v5e:2x2
jax: 0.10.0
libtpu: 0.0.40
codegen_flags: <defaults>
</compile_context>

<pallas_src>
import functools

import jax
import jax.numpy as jnp
from jax.experimental import pallas as pl
from jax.experimental.pallas import tpu as pltpu

LN_EPS = 1e-5

# Max rows per grid step.  16384 bf16 rows at E=32 is a 1 MiB x tile
# (2 MiB double-buffered); intermediates are (16384, 32) f32 = 2 MiB each.
_MAX_BATCH_TILE = 16384
# Sublane granularity safe for both f32 (8) and bf16 (16) batch tiles.
_ROW_ALIGN = 16


def _round_up(n, m):
    return ((n + m - 1) // m) * m


def steerable_policy_kernel(x_ref, w1_ref, w2_ref, w3_ref, p_ref, o_ref):
    """One (TB, E) batch tile -> (TB, 5) logits.

    p_ref rows: 0=b1, 1=gamma1, 2=beta1, 3=b2, 4=gamma2, 5=beta2 (6,7 padding).
    """
    H = w1_ref.shape[1]
    # Single upcast in VMEM: the HBM stream stays narrow (bf16), the math
    # (matmul accumulation, LN stats, tanh) stays f32.
    x = x_ref[...].astype(jnp.float32)
    p = p_ref[...]
    inv_h = jnp.full((H, 1), 1.0 / H, dtype=jnp.float32)

    def layernorm_tanh(h, gamma, beta):
        # LN statistics on the MXU (huge slack at K=H=32) instead of XLU
        # cross-lane reduces: mean = h @ 1/H, E[h^2] = (h*h) @ 1/H.
        mean = jnp.dot(h, inv_h, preferred_element_type=jnp.float32)       # (TB, 1)
        msq = jnp.dot(h * h, inv_h, preferred_element_type=jnp.float32)    # (TB, 1)
        var = jnp.maximum(msq - mean * mean, 0.0)                          # biased var
        return jnp.tanh((h - mean) * jax.lax.rsqrt(var + LN_EPS) * gamma + beta)

    # Linear1 -> LayerNorm1 -> tanh
    h = jnp.dot(x, w1_ref[...], preferred_element_type=jnp.float32) + p[0:1, :]
    h = layernorm_tanh(h, p[1:2, :], p[2:3, :])

    # Linear2 -> LayerNorm2 -> tanh
    h = jnp.dot(h, w2_ref[...], preferred_element_type=jnp.float32) + p[3:4, :]
    h = layernorm_tanh(h, p[4:5, :], p[5:6, :])

    # Output linear (no bias); narrow (TB, 5) store — masked vst, tiny traffic.
    o_ref[...] = jnp.dot(h, w3_ref[...], preferred_element_type=jnp.float32).astype(
        o_ref.dtype
    )


@functools.partial(jax.jit, static_argnames=("stream_dtype",))
def steerable_policy_forward(x, params, stream_dtype=jnp.bfloat16):
    """x: (B, E).  params = (w1, w2, w3, packed_ln).  Returns (B, 5) f32.

    stream_dtype controls the dtype of the x HBM stream (bf16 halves the
    dominant HBM traffic; pass jnp.float32 for bit-tight f32 results).
    """
    w1, w2, w3, p = params
    B, E = x.shape
    H = w1.shape[1]
    O = w3.shape[1]

    # Cast at the pallas_call boundary; no-op if the caller already provides
    # stream_dtype (the preferred large-batch deployment).
    x = x.astype(stream_dtype)

    # Batch tiling: tiles large enough to amortize per-grid-step overhead, but
    # always >= 2 (and an even number of) steps when possible so the
    # "parallel" batch axis can shard across v7x's two TensorCores.  The last
    # block may be ragged (no jnp.pad copy of x); Pallas masks its output.
    if B <= _ROW_ALIGN:
        tb = _ROW_ALIGN
    else:
        n_steps = max(2, pl.cdiv(B, _MAX_BATCH_TILE))
        if n_steps % 2:
            n_steps += 1
        tb = min(_MAX_BATCH_TILE, _round_up(pl.cdiv(B, n_steps), _ROW_ALIGN))
    grid = (pl.cdiv(B, tb),)

    x_bytes = B * E * jnp.dtype(stream_dtype).itemsize
    cost = pl.CostEstimate(
        flops=2 * B * (E * H + H * H + H * O + 4 * H),
        transcendentals=2 * B * (H + 1),  # tanh + rsqrt
        bytes_accessed=x_bytes + B * O * 4 + (E * H + H * H + H * O + 8 * H) * 4,
    )

    return pl.pallas_call(
        steerable_policy_kernel,
        out_shape=jax.ShapeDtypeStruct((B, O), jnp.float32),
        grid=grid,
        in_specs=[
            pl.BlockSpec((tb, E), lambda i: (i, 0)),   # x: streamed per tile
            pl.BlockSpec((E, H), lambda i: (0, 0)),    # w1: VMEM-resident
            pl.BlockSpec((H, H), lambda i: (0, 0)),    # w2: VMEM-resident
            pl.BlockSpec((H, O), lambda i: (0, 0)),    # w3: VMEM-resident
            pl.BlockSpec((8, H), lambda i: (0, 0)),    # packed bias/gamma/beta
        ],
        out_specs=pl.BlockSpec((tb, O), lambda i: (i, 0)),
        compiler_params=pltpu.CompilerParams(
            dimension_semantics=("parallel",),          # megacore on v7x
            vmem_limit_bytes=48 * 1024 * 1024,          # headroom under v7x's 64 MiB
        ),
        cost_estimate=cost,
    )(x, w1, w2, w3, p)


def init_params(key, embedding_size, policy_hidden):
    """Xavier-normal weights (matching the PyTorch init) + packed LN/bias params."""
    k1, k2, k3, k4 = jax.random.split(key, 4)

    def xavier(k, fan_in, fan_out):
        std = (2.0 / (fan_in + fan_out)) ** 0.5
        # stored as (in, out) — transposed relative to torch's (out, in)
        return jax.random.normal(k, (fan_in, fan_out), jnp.float32) * std

    H = policy_hidden
    w1 = xavier(k1, embedding_size, H)
    w2 = xavier(k2, H, H)
    w3 = xavier(k3, H, 5)

    # Non-trivial bias / gamma / beta so the broadcasts + LN affine are exercised.
    kb1, kg1, kbe1, kb2, kg2, kbe2 = jax.random.split(k4, 6)
    b1 = jax.random.normal(kb1, (H,), jnp.float32) * 0.1
    g1 = 1.0 + jax.random.normal(kg1, (H,), jnp.float32) * 0.05
    be1 = jax.random.normal(kbe1, (H,), jnp.float32) * 0.1
    b2 = jax.random.normal(kb2, (H,), jnp.float32) * 0.1
    g2 = 1.0 + jax.random.normal(kg2, (H,), jnp.float32) * 0.05
    be2 = jax.random.normal(kbe2, (H,), jnp.float32) * 0.1

    pad = jnp.zeros((H,), jnp.float32)
    packed = jnp.stack([b1, g1, be1, b2, g2, be2, pad, pad], axis=0)  # (8, H)
    return (w1, w2, w3, packed)


def _layernorm_ref(h, gamma, beta):
    mean = jnp.mean(h, axis=-1, keepdims=True)
    var = jnp.mean(jnp.square(h - mean), axis=-1, keepdims=True)
    return (h - mean) * jax.lax.rsqrt(var + LN_EPS) * gamma + beta


def reference_forward(x, params):
    """Pure-JAX reference mirroring the PyTorch forward."""
    w1, w2, w3, p = params
    b1, g1, be1, b2, g2, be2 = (p[i] for i in range(6))
    h = x @ w1 + b1
    h = jnp.tanh(_layernorm_ref(h, g1, be1))
    h = h @ w2 + b2
    h = jnp.tanh(_layernorm_ref(h, g2, be2))
    return h @ w3


if __name__ == "__main__":
    # batch deliberately not a multiple of the tile so the ragged last block
    # and the >=2-step grid are both exercised.
    B, E, H = 50, 32, 32

    key = jax.random.PRNGKey(0)
    kx, kp = jax.random.split(key)
    x = jax.random.normal(kx, (B, E), jnp.float32)
    params = init_params(kp, E, H)

    # f32-streamed path vs. pure-JAX reference.
    out_f32 = jax.block_until_ready(
        steerable_policy_forward(x, params, stream_dtype=jnp.float32)
    )
    ref = reference_forward(x, params)
    assert out_f32.shape == (B, 5)
    assert jnp.allclose(out_f32, ref, atol=1e-4, rtol=1e-4), "f32 path mismatch"

    # Default bf16-streamed path vs. reference on the bf16-rounded input.
    out_bf16 = jax.block_until_ready(steerable_policy_forward(x, params))
    ref_bf16 = reference_forward(x.astype(jnp.bfloat16).astype(jnp.float32), params)
    assert out_bf16.shape == (B, 5)
    assert jnp.allclose(out_bf16, ref_bf16, atol=1e-3, rtol=1e-3), "bf16 path mismatch"

    print("KERNEL_OK")
</pallas_src>

<mosaic_0001>
module attributes {stable_mosaic.version = 11 : i64} {
  func.func @steerable_policy_kernel(%arg0: i32, %arg1: memref<32x32xf32, #tpu.memory_space<vmem>>, %arg2: memref<32x32xf32, #tpu.memory_space<vmem>>, %arg3: memref<32x32xf32, #tpu.memory_space<vmem>>, %arg4: memref<32x5xf32, #tpu.memory_space<vmem>>, %arg5: memref<8x32xf32, #tpu.memory_space<vmem>>, %arg6: memref<32x5xf32, #tpu.memory_space<vmem>>) attributes {dimension_semantics = [#tpu.dimension_semantics<parallel>], iteration_bounds = array<i64: 2>, scalar_prefetch = 0 : i64, scratch_operands = 0 : i64, tpu.core_type = #tpu.core_type<tc>, window_params = [{transform_indices = @transform_0, window_bounds = array<i64: 32, 32>}, {pipeline_mode = #tpu.pipeline_mode<synchronous>, transform_indices = @transform_1, window_bounds = array<i64: 32, 32>}, {pipeline_mode = #tpu.pipeline_mode<synchronous>, transform_indices = @transform_2, window_bounds = array<i64: 32, 32>}, {pipeline_mode = #tpu.pipeline_mode<synchronous>, transform_indices = @transform_3, window_bounds = array<i64: 32, 5>}, {pipeline_mode = #tpu.pipeline_mode<synchronous>, transform_indices = @transform_4, window_bounds = array<i64: 8, 32>}, {transform_indices = @transform_5, window_bounds = array<i64: 32, 5>}]} {
    %c0 = arith.constant 0 : index
    %c0_0 = arith.constant 0 : index
    %0 = vector.load %arg1[%c0, %c0_0] : memref<32x32xf32, #tpu.memory_space<vmem>>, vector<32x32xf32>
    %c0_1 = arith.constant 0 : index
    %c0_2 = arith.constant 0 : index
    %1 = vector.load %arg5[%c0_1, %c0_2] : memref<8x32xf32, #tpu.memory_space<vmem>>, vector<8x32xf32>
    %cst = arith.constant 3.125000e-02 : f32
    %2 = vector.broadcast %cst : f32 to vector<32x1xf32>
    %c0_3 = arith.constant 0 : index
    %c0_4 = arith.constant 0 : index
    %3 = vector.load %arg2[%c0_3, %c0_4] : memref<32x32xf32, #tpu.memory_space<vmem>>, vector<32x32xf32>
    %cst_5 = arith.constant dense<0.000000e+00> : vector<32x32xf32>
    %4 = tpu.matmul %0, %3, %cst_5 {dimension_numbers = #tpu.dot_dimension_numbers<[1], [0], [0], [1], [0, 0, 1, 1], [], []>} : vector<32x32xf32>, vector<32x32xf32>, vector<32x32xf32> -> vector<32x32xf32>
    %5 = vector.extract_strided_slice %1 {offsets = [0, 0], sizes = [1, 32], strides = [1, 1]} : vector<8x32xf32> to vector<1x32xf32>
    %6 = vector.broadcast %5 : vector<1x32xf32> to vector<32x32xf32>
    %7 = arith.addf %4, %6 : vector<32x32xf32>
    %8 = vector.extract_strided_slice %1 {offsets = [1, 0], sizes = [1, 32], strides = [1, 1]} : vector<8x32xf32> to vector<1x32xf32>
    %9 = vector.extract_strided_slice %1 {offsets = [2, 0], sizes = [1, 32], strides = [1, 1]} : vector<8x32xf32> to vector<1x32xf32>
    %cst_6 = arith.constant dense<0.000000e+00> : vector<32x1xf32>
    %10 = tpu.matmul %7, %2, %cst_6 {dimension_numbers = #tpu.dot_dimension_numbers<[1], [0], [0], [1], [0, 0, 1, 1], [], []>} : vector<32x32xf32>, vector<32x1xf32>, vector<32x1xf32> -> vector<32x1xf32>
    %11 = arith.mulf %7, %7 : vector<32x32xf32>
    %cst_7 = arith.constant dense<0.000000e+00> : vector<32x1xf32>
    %12 = tpu.matmul %11, %2, %cst_7 {dimension_numbers = #tpu.dot_dimension_numbers<[1], [0], [0], [1], [0, 0, 1, 1], [], []>} : vector<32x32xf32>, vector<32x1xf32>, vector<32x1xf32> -> vector<32x1xf32>
    %13 = arith.mulf %10, %10 : vector<32x1xf32>
    %14 = arith.subf %12, %13 : vector<32x1xf32>
    %cst_8 = arith.constant 0.000000e+00 : f32
    %15 = vector.broadcast %cst_8 : f32 to vector<32x1xf32>
    %16 = arith.maximumf %14, %15 : vector<32x1xf32>
    %17 = vector.broadcast %10 : vector<32x1xf32> to vector<32x32xf32>
    %18 = arith.subf %7, %17 : vector<32x32xf32>
    %cst_9 = arith.constant 9.99999974E-6 : f32
    %19 = vector.broadcast %cst_9 : f32 to vector<32x1xf32>
    %20 = arith.addf %16, %19 : vector<32x1xf32>
    %21 = math.rsqrt %20 : vector<32x1xf32>
    %22 = vector.broadcast %21 : vector<32x1xf32> to vector<32x32xf32>
    %23 = arith.mulf %18, %22 : vector<32x32xf32>
    %24 = vector.broadcast %8 : vector<1x32xf32> to vector<32x32xf32>
    %25 = arith.mulf %23, %24 : vector<32x32xf32>
    %26 = vector.broadcast %9 : vector<1x32xf32> to vector<32x32xf32>
    %27 = arith.addf %25, %26 : vector<32x32xf32>
    %28 = math.tanh %27 : vector<32x32xf32>
    %c0_10 = arith.constant 0 : index
    %c0_11 = arith.constant 0 : index
    %29 = vector.load %arg3[%c0_10, %c0_11] : memref<32x32xf32, #tpu.memory_space<vmem>>, vector<32x32xf32>
    %cst_12 = arith.constant dense<0.000000e+00> : vector<32x32xf32>
    %30 = tpu.matmul %28, %29, %cst_12 {dimension_numbers = #tpu.dot_dimension_numbers<[1], [0], [0], [1], [0, 0, 1, 1], [], []>} : vector<32x32xf32>, vector<32x32xf32>, vector<32x32xf32> -> vector<32x32xf32>
    %31 = vector.extract_strided_slice %1 {offsets = [3, 0], sizes = [1, 32], strides = [1, 1]} : vector<8x32xf32> to vector<1x32xf32>
    %32 = vector.broadcast %31 : vector<1x32xf32> to vector<32x32xf32>
    %33 = arith.addf %30, %32 : vector<32x32xf32>
    %34 = vector.extract_strided_slice %1 {offsets = [4, 0], sizes = [1, 32], strides = [1, 1]} : vector<8x32xf32> to vector<1x32xf32>
    %35 = vector.extract_strided_slice %1 {offsets = [5, 0], sizes = [1, 32], strides = [1, 1]} : vector<8x32xf32> to vector<1x32xf32>
    %cst_13 = arith.constant dense<0.000000e+00> : vector<32x1xf32>
    %36 = tpu.matmul %33, %2, %cst_13 {dimension_numbers = #tpu.dot_dimension_numbers<[1], [0], [0], [1], [0, 0, 1, 1], [], []>} : vector<32x32xf32>, vector<32x1xf32>, vector<32x1xf32> -> vector<32x1xf32>
    %37 = arith.mulf %33, %33 : vector<32x32xf32>
    %cst_14 = arith.constant dense<0.000000e+00> : vector<32x1xf32>
    %38 = tpu.matmul %37, %2, %cst_14 {dimension_numbers = #tpu.dot_dimension_numbers<[1], [0], [0], [1], [0, 0, 1, 1], [], []>} : vector<32x32xf32>, vector<32x1xf32>, vector<32x1xf32> -> vector<32x1xf32>
    %39 = arith.mulf %36, %36 : vector<32x1xf32>
    %40 = arith.subf %38, %39 : vector<32x1xf32>
    %cst_15 = arith.constant 0.000000e+00 : f32
    %41 = vector.broadcast %cst_15 : f32 to vector<32x1xf32>
    %42 = arith.maximumf %40, %41 : vector<32x1xf32>
    %43 = vector.broadcast %36 : vector<32x1xf32> to vector<32x32xf32>
    %44 = arith.subf %33, %43 : vector<32x32xf32>
    %cst_16 = arith.constant 9.99999974E-6 : f32
    %45 = vector.broadcast %cst_16 : f32 to vector<32x1xf32>
    %46 = arith.addf %42, %45 : vector<32x1xf32>
    %47 = math.rsqrt %46 : vector<32x1xf32>
    %48 = vector.broadcast %47 : vector<32x1xf32> to vector<32x32xf32>
    %49 = arith.mulf %44, %48 : vector<32x32xf32>
    %50 = vector.broadcast %34 : vector<1x32xf32> to vector<32x32xf32>
    %51 = arith.mulf %49, %50 : vector<32x32xf32>
    %52 = vector.broadcast %35 : vector<1x32xf32> to vector<32x32xf32>
    %53 = arith.addf %51, %52 : vector<32x32xf32>
    %54 = math.tanh %53 : vector<32x32xf32>
    %c0_17 = arith.constant 0 : index
    %c0_18 = arith.constant 0 : index
    %55 = vector.load %arg4[%c0_17, %c0_18] : memref<32x5xf32, #tpu.memory_space<vmem>>, vector<32x5xf32>
    %cst_19 = arith.constant dense<0.000000e+00> : vector<32x5xf32>
    %56 = tpu.matmul %54, %55, %cst_19 {dimension_numbers = #tpu.dot_dimension_numbers<[1], [0], [0], [1], [0, 0, 1, 1], [], []>} : vector<32x32xf32>, vector<32x5xf32>, vector<32x5xf32> -> vector<32x5xf32>
    %c0_20 = arith.constant 0 : index
    %c0_21 = arith.constant 0 : index
    %57 = vector.load %arg6[%c0_20, %c0_21] : memref<32x5xf32, #tpu.memory_space<vmem>>, vector<32x5xf32>
    tpu.vector_store %arg6[%c0_20, %c0_21], %56 {strides = array<i32>} : memref<32x5xf32, #tpu.memory_space<vmem>>, vector<32x5xf32>,
    return
  }
  func.func @transform_0(%arg0: i32) -> (i32, i32) {
    %c0_i32 = arith.constant 0 : i32
    %c0_i32_0 = arith.constant 0 : i32
    return %arg0, %c0_i32 : i32, i32
  }
  func.func @transform_1(%arg0: i32) -> (i32, i32) {
    %c0_i32 = arith.constant 0 : i32
    %c0_i32_0 = arith.constant 0 : i32
    %c0_i32_1 = arith.constant 0 : i32
    return %c0_i32, %c0_i32_0 : i32, i32
  }
  func.func @transform_2(%arg0: i32) -> (i32, i32) {
    %c0_i32 = arith.constant 0 : i32
    %c0_i32_0 = arith.constant 0 : i32
    %c0_i32_1 = arith.constant 0 : i32
    return %c0_i32, %c0_i32_0 : i32, i32
  }
  func.func @transform_3(%arg0: i32) -> (i32, i32) {
    %c0_i32 = arith.constant 0 : i32
    %c0_i32_0 = arith.constant 0 : i32
    %c0_i32_1 = arith.constant 0 : i32
    return %c0_i32, %c0_i32_0 : i32, i32
  }
  func.func @transform_4(%arg0: i32) -> (i32, i32) {
    %c0_i32 = arith.constant 0 : i32
    %c0_i32_0 = arith.constant 0 : i32
    %c0_i32_1 = arith.constant 0 : i32
    return %c0_i32, %c0_i32_0 : i32, i32
  }
  func.func @transform_5(%arg0: i32) -> (i32, i32) {
    %c0_i32 = arith.constant 0 : i32
    %c0_i32_0 = arith.constant 0 : i32
    return %arg0, %c0_i32 : i32, i32
  }
}

</mosaic_0001>

<llo_original>
// kernel: steerable_policy_forward.1
$region0: #{steerable_policy_forward.1}
  #allocation0 [shape = 'u32[]', space=smem, size = 0x4, offset = 0x4, fixed_abs, tag = 'smem constant byte address 0x4 - core index']
  #allocation1 [shape = 'u32[72,128]{1,0:T(1,128)}', space=vmem, size = 0x9000, scoped, tag = 'internal scratch']
  %s0 = inlined_call_operand.vmem [shape: f32[50,32], index: 0, kind: input, shape index: {}]
  %s1 = inlined_call_operand.vmem [shape: f32[32,32], index: 1, kind: input, shape index: {}]
  %s2 = inlined_call_operand.vmem [shape: f32[32,32], index: 2, kind: input, shape index: {}]
  %s3 = inlined_call_operand.vmem [shape: f32[32,5], index: 3, kind: input, shape index: {}]
  %s4 = inlined_call_operand.vmem [shape: f32[8,32], index: 4, kind: input, shape index: {}]
  %s5 = inlined_call_operand.vmem [shape: f32[50,5], index: 5, kind: output, shape index: {}]
  %s6 = sld [smem:[#allocation0]]
  $region101: #{steerable_policy_forward.1} parent=0
    _
  %s8 = ssub.s32 1, %s6
  %s9 = scalar_select 0, %s8, %s6
  $region1: #{steerable_policy_forward.1} parent=0
    #allocation2 [shape = 'u8[32768]{0}', space=vmem, size = 0x8000, scoped, tag = 'output window, operand 0']
    loop: start=0, step=1, limit=4
    $region2: #{steerable_policy_forward.1} parent=1 // loop_pre_header
      _
    $region3: #{steerable_policy_forward.1} parent=1 // loop_header
      %s11 = sphi 0, %s15
      %p12 = scmp.ge.s32.totalorder %s11, 4
      %s21 = sphi 0, %s23
      %s24 = sphi 0, %s21
      %s25 = sphi 0, %s24
      %s41 = sphi 0, %s25
      %s45 = sphi 0, %s45
      %s47 = sphi 0, %s45
      %s48 = sphi 0, %s47
      %s62 = sphi 0, %s48
      %s66 = sphi 0, %s66
      %s68 = sphi 0, %s66
      %s69 = sphi 0, %s68
      %s83 = sphi 0, %s69
      %s87 = sphi 0, %s87
      %s89 = sphi 0, %s87
      %s90 = sphi 0, %s89
      %s104 = sphi 0, %s90
      %s108 = sphi 0, %s108
      %s110 = sphi 0, %s108
      %s111 = sphi 0, %s110
      %s125 = sphi 0, %s111
      %s131 = sphi 0, %s133
      %s134 = sphi 0, %s131
      %s135 = sphi 0, %s134
      %s151 = sphi 0, %s135
    $region4: #{steerable_policy_forward.1} parent=1 // loop_header_branch
      %14 = sbr.rel (%p12) target = $region8
    $region5: #{steerable_policy_forward.1} parent=1 // loop_body
      %s16 = ssub.s32 %s11, 1
      %s17 = ssub.s32 %s11, 2
      %s18 = sadd.s32 %s11, 1
      %s19 = ssub.s32 %s11, %s18
      %p20 = scmp.eq.s32.totalorder %s19, 0
      %s22 = sadd.s32 %s21, 1
      %s23 = scalar_select %p20, %s21, %s22
      %p26 = pneg %p20
      %p27 = scmp.eq.s32.totalorder %s11, 1
      %p28 = por %p26, %p27
      %p29 = scmp.ne.s32.totalorder %s21, %s24
      %p30 = scmp.eq.s32.totalorder %s11, 0
      %p31 = por %p29, %p30
      %p32 = scmp.ne.s32.totalorder %s21, %s24
      %p33 = scmp.eq.s32.totalorder %s16, 1
      %p34 = por %p32, %p33
      %p35 = scmp.ne.s32.totalorder %s24, %s25
      %p36 = scmp.eq.s32.totalorder %s16, 0
      %p37 = por %p35, %p36
      %p38 = scmp.ne.s32.totalorder %s24, %s25
      %p39 = scmp.eq.s32.totalorder %s17, 1
      %p40 = por %p38, %p39
      %p42 = scmp.ne.s32.totalorder %s25, %s41
      %p43 = scmp.eq.s32.totalorder %s17, 0
      %p44 = por %p42, %p43
      %s46 = sadd.s32 %s45, 1
      %p49 = scmp.eq.s32.totalorder %s11, 1
      %p50 = scmp.ne.s32.totalorder %s45, %s47
      %p51 = scmp.eq.s32.totalorder %s11, 0
      %p52 = por %p50, %p51
      %p53 = scmp.ne.s32.totalorder %s45, %s47
      %p54 = scmp.eq.s32.totalorder %s16, 1
      %p55 = por %p53, %p54
      %p56 = scmp.ne.s32.totalorder %s47, %s48
      %p57 = scmp.eq.s32.totalorder %s16, 0
      %p58 = por %p56, %p57
      %p59 = scmp.ne.s32.totalorder %s47, %s48
      %p60 = scmp.eq.s32.totalorder %s17, 1
      %p61 = por %p59, %p60
      %p63 = scmp.ne.s32.totalorder %s48, %s62
      %p64 = scmp.eq.s32.totalorder %s17, 0
      %p65 = por %p63, %p64
      %s67 = sadd.s32 %s66, 1
      %p70 = scmp.eq.s32.totalorder %s11, 1
      %p71 = scmp.ne.s32.totalorder %s66, %s68
      %p72 = scmp.eq.s32.totalorder %s11, 0
      %p73 = por %p71, %p72
      %p74 = scmp.ne.s32.totalorder %s66, %s68
      %p75 = scmp.eq.s32.totalorder %s16, 1
      %p76 = por %p74, %p75
      %p77 = scmp.ne.s32.totalorder %s68, %s69
      %p78 = scmp.eq.s32.totalorder %s16, 0
      %p79 = por %p77, %p78
      %p80 = scmp.ne.s32.totalorder %s68, %s69
      %p81 = scmp.eq.s32.totalorder %s17, 1
      %p82 = por %p80, %p81
      %p84 = scmp.ne.s32.totalorder %s69, %s83
      %p85 = scmp.eq.s32.totalorder %s17, 0
      %p86 = por %p84, %p85
      %s88 = sadd.s32 %s87, 1
      %p91 = scmp.eq.s32.totalorder %s11, 1
      %p92 = scmp.ne.s32.totalorder %s87, %s89
      %p93 = scmp.eq.s32.totalorder %s11, 0
      %p94 = por %p92, %p93
      %p95 = scmp.ne.s32.totalorder %s87, %s89
      %p96 = scmp.eq.s32.totalorder %s16, 1
      %p97 = por %p95, %p96
      %p98 = scmp.ne.s32.totalorder %s89, %s90
      %p99 = scmp.eq.s32.totalorder %s16, 0
      %p100 = por %p98, %p99
      %p101 = scmp.ne.s32.totalorder %s89, %s90
      %p102 = scmp.eq.s32.totalorder %s17, 1
      %p103 = por %p101, %p102
      %p105 = scmp.ne.s32.totalorder %s90, %s104
      %p106 = scmp.eq.s32.totalorder %s17, 0
      %p107 = por %p105, %p106
      %s109 = sadd.s32 %s108, 1
      %p112 = scmp.eq.s32.totalorder %s11, 1
      %p113 = scmp.ne.s32.totalorder %s108, %s110
      %p114 = scmp.eq.s32.totalorder %s11, 0
      %p115 = por %p113, %p114
      %p116 = scmp.ne.s32.totalorder %s108, %s110
      %p117 = scmp.eq.s32.totalorder %s16, 1
      %p118 = por %p116, %p117
      %p119 = scmp.ne.s32.totalorder %s110, %s111
      %p120 = scmp.eq.s32.totalorder %s16, 0
      %p121 = por %p119, %p120
      %p122 = scmp.ne.s32.totalorder %s110, %s111
      %p123 = scmp.eq.s32.totalorder %s17, 1
      %p124 = por %p122, %p123
      %p126 = scmp.ne.s32.totalorder %s111, %s125
      %p127 = scmp.eq.s32.totalorder %s17, 0
      %p128 = por %p126, %p127
      %s129 = ssub.s32 %s11, %s18
      %p130 = scmp.eq.s32.totalorder %s129, 0
      %s132 = sadd.s32 %s131, 1
      %s133 = scalar_select %p130, %s131, %s132
      %p136 = pneg %p130
      %p137 = scmp.eq.s32.totalorder %s11, 1
      %p138 = por %p136, %p137
      %p139 = scmp.ne.s32.totalorder %s131, %s134
      %p140 = scmp.eq.s32.totalorder %s11, 0
      %p141 = por %p139, %p140
      %p142 = scmp.ne.s32.totalorder %s131, %s134
      %p143 = scmp.eq.s32.totalorder %s16, 1
      %p144 = por %p142, %p143
      %p145 = scmp.ne.s32.totalorder %s134, %s135
      %p146 = scmp.eq.s32.totalorder %s16, 0
      %p147 = por %p145, %p146
      %p148 = scmp.ne.s32.totalorder %s134, %s135
      %p149 = scmp.eq.s32.totalorder %s17, 1
      %p150 = por %p148, %p149
      %p152 = scmp.ne.s32.totalorder %s135, %s151
      %p153 = scmp.eq.s32.totalorder %s17, 0
      %p154 = por %p152, %p153
      %p155 = scmp.le.s32.totalorder 1, %s11
      %p156 = scmp.lt.s32.totalorder %s11, 3
      %p157 = pnand %p155, %p156
      %p158 = pneg %p157
      // Predicated region
      $region9: #{steerable_policy_forward.1} parent=5 // pred_check
        _
      $region10: #{steerable_policy_forward.1} parent=5 // pred_check_branch
        %160 = sbr.rel (%p157) target = $region12
      $region11: #{steerable_policy_forward.1} parent=5 // pred_region
        %s161 = ssub.s32 %s11, 1
        // Predicated region
        $region13: #{steerable_policy_forward.1} parent=11 // pred_check
          %p162 = pneg %p58
        $region14: #{steerable_policy_forward.1} parent=11 // pred_check_branch
          %164 = sbr.rel (%p162) target = $region16
        $region15: #{steerable_policy_forward.1} parent=11 // pred_region
          _
        $region16: #{steerable_policy_forward.1} parent=11 // pred_fallthru
          _
        // Predicated region
        $region17: #{steerable_policy_forward.1} parent=11 // pred_check
          %p165 = pneg %p79
        $region18: #{steerable_policy_forward.1} parent=11 // pred_check_branch
          %167 = sbr.rel (%p165) target = $region20
        $region19: #{steerable_policy_forward.1} parent=11 // pred_region
          _
        $region20: #{steerable_policy_forward.1} parent=11 // pred_fallthru
          _
        // Predicated region
        $region21: #{steerable_policy_forward.1} parent=11 // pred_check
          %p168 = pneg %p100
        $region22: #{steerable_policy_forward.1} parent=11 // pred_check_branch
          %170 = sbr.rel (%p168) target = $region24
        $region23: #{steerable_policy_forward.1} parent=11 // pred_region
          _
        $region24: #{steerable_policy_forward.1} parent=11 // pred_fallthru
          _
        // Predicated region
        $region25: #{steerable_policy_forward.1} parent=11 // pred_check
          %p171 = pneg %p121
        $region26: #{steerable_policy_forward.1} parent=11 // pred_check_branch
          %173 = sbr.rel (%p171) target = $region28
        $region27: #{steerable_policy_forward.1} parent=11 // pred_region
          _
        $region28: #{steerable_policy_forward.1} parent=11 // pred_fallthru
          _
      $region12: #{steerable_policy_forward.1} parent=5 // pred_fallthru
        _
      %p174 = scmp.lt.s32.totalorder %s11, 2
      // Predicated region
      $region29: #{steerable_policy_forward.1} parent=5 // pred_check
        %p175 = pneg %p174
      $region30: #{steerable_policy_forward.1} parent=5 // pred_check_branch
        %177 = sbr.rel (%p175) target = $region32
      $region31: #{steerable_policy_forward.1} parent=5 // pred_region
        // Predicated region
        $region33: #{steerable_policy_forward.1} parent=31 // pred_check
          %p178 = pneg %p31
        $region34: #{steerable_policy_forward.1} parent=31 // pred_check_branch
          %180 = sbr.rel (%p178) target = $region36
        $region35: #{steerable_policy_forward.1} parent=31 // pred_region
          %s181 = smul.u32 4, %s11
          %s182 = ssub.s32 7, %s181
          %p183 = scmp.lt.s32.totalorder %s182, 4
          %s184 = scalar_select %p183, %s182, 4
          %s185 = smul.u32 8, %s184
          %p186 = scmp.lt.s32.totalorder %s181, 6
          %s187 = scalar_select %p186, %s181, 6
          %s188 = smul.addr %s187, 8
          %s189 = scalar_lea.vmem %s0, %s188
          %s190 = smul.u32 4, %s11
          %s191 = ssub.s32 7, %s190
          %p192 = scmp.lt.s32.totalorder %s191, 4
          %s193 = scalar_select %p192, %s191, 4
          %s194 = smul.u32 8, %s193
        $region36: #{steerable_policy_forward.1} parent=31 // pred_fallthru
          _
      $region32: #{steerable_policy_forward.1} parent=5 // pred_fallthru
        _
      %p195 = scmp.le.s32.totalorder 1, %s11
      %p196 = scmp.lt.s32.totalorder %s11, 3
      %p197 = pnand %p195, %p196
      %p198 = pneg %p197
      // Predicated region
      $region37: #{steerable_policy_forward.1} parent=5 // pred_check
        _
      $region38: #{steerable_policy_forward.1} parent=5 // pred_check_branch
        %200 = sbr.rel (%p197) target = $region40
      $region39: #{steerable_policy_forward.1} parent=5 // pred_region
        %s201 = ssub.s32 %s11, 1
        %s202 = smul.u32 4, %s16
        %s203 = ssub.s32 7, %s202
        %p204 = scmp.lt.s32.totalorder %s203, 4
        %s205 = scalar_select %p204, %s203, 4
        %s206 = smul.u32 8, %s205
        %p207 = scmp.lt.s32.totalorder %s202, 6
        %s208 = scalar_select %p207, %s202, 6
        %s209 = smul.addr %s208, 8
        %s210 = scalar_lea.vmem %s0, %s209
        %p211 = pneg %p37
        %p212 = pneg %p34
        %p213 = pneg %p58
        %p214 = pneg %p55
        %p215 = pneg %p79
        %p216 = pneg %p76
        %p217 = pneg %p100
        %p218 = pneg %p97
        %p219 = pneg %p121
        %p220 = pneg %p118
        %p221 = pneg %p147
        %p222 = pneg %p144
        %s223 = sand.u32 %s134, 1
        %s224 = sand.u32 %s134, 1
        %s225 = smul.addr %s224, 32
        %s226 = scalar_lea.vmem [#allocation2], %s225
        %s227 = smul.u32 4, %s16
        %s228 = ssub.s32 7, %s227
        %p229 = scmp.lt.s32.totalorder %s228, 4
        %s230 = scalar_select %p229, %s228, 4
        %s231 = smul.u32 8, %s230
        %p232 = scmp.lt.s32.totalorder %s227, 6
        %s233 = scalar_select %p232, %s227, 6
        %s234 = smul.addr %s233, 8
        %s235 = scalar_lea.vmem %s0, %s234
        %s236 = smul.u32 4, %s16
        %s237 = ssub.s32 7, %s236
        %p238 = scmp.lt.s32.totalorder %s237, 4
        %s239 = scalar_select %p238, %s237, 4
        %s240 = smul.u32 8, %s239
        %s241 = smul.u32 4, %s16
        %s242 = ssub.s32 7, %s241
        %p243 = scmp.lt.s32.totalorder %s242, 4
        %s244 = scalar_select %p243, %s242, 4
        %s245 = smul.u32 8, %s244
        %v246 = vld [vmem:[%s235] sm:$0xff]
        %v247 = vld [vmem:[%s235 + $0x8] sm:$0xff]
        %v248 = vld [vmem:[%s235 + $0x10] sm:$0xff]
        %v249 = vld [vmem:[%s235 + $0x18] sm:$0xff]
        %v250 = vld [vmem:[%s4] sm:$0xff]
        %v251 = vld [vmem:[%s1] sm:$0xff]
        %v252 = vld [vmem:[%s1 + $0x8] sm:$0xff]
        %v253 = vld [vmem:[%s1 + $0x10] sm:$0xff]
        %v254 = vld [vmem:[%s1 + $0x18] sm:$0xff]
        %v255 = vperm.slane %v250, 0
        %vm256 = vcmask 261120
        %v258 = vsel %vm256, %v246, 0
        %v261 = vsel %vm256, %v247, 0
        %v264 = vsel %vm256, %v248, 0
        %v267 = vsel %vm256, %v249, 0
        %269 = vmatpush.msra.mxu0 0.0
        %270 = vmatpush.msra.mxu0 0.0
        %271 = vmatpush.msra.mxu0 0.0
        %272 = vmatpush.msra.mxu0 0.0
        %273 = vmatpush.msra.mxu0 0.0
        %274 = vmatpush.msra.mxu0 0.0
        %275 = vmatpush.msra.mxu0 0.0
        %276 = vmatpush.msra.mxu0 0.0
        %277 = vmatpush.msra.mxu0 0.0
        %278 = vmatpush.msra.mxu0 0.0
        %279 = vmatpush.msra.mxu0 0.0
        %280 = vmatpush.msra.mxu0 0.0
        %281 = vmatpush.msra.mxu0 %v254
        %282 = vmatpush.msra.mxu0 %v253
        %283 = vmatpush.msra.mxu0 %v252
        %284 = vmatpush.msra.mxu0 %v251
        %285 = vmatmul.f32.gmra.mxu0 %v258
        %v286 = vpop.f32.mrf.mxu0
        %v287 = vadd.f32 %v255, %v286
        %288 = vmatmul.f32.gmra.mxu0 %v261
        %v289 = vpop.f32.mrf.mxu0
        %v290 = vadd.f32 %v255, %v289
        %291 = vmatmul.f32.gmra.mxu0 %v264
        %v292 = vpop.f32.mrf.mxu0
        %v293 = vadd.f32 %v255, %v292
        %294 = vmatmul.f32.gmra.mxu0 %v267
        %v295 = vpop.f32.mrf.mxu0
        %v296 = vadd.f32 %v255, %v295
        %297 = vdwg.mxu0
        %v299 = vsel %vm256, %v287, 0
        %v302 = vsel %vm256, %v290, 0
        %v305 = vsel %vm256, %v293, 0
        %v308 = vsel %vm256, %v296, 0
        %310 = vmatpush.msra.mxu0 0.0
        %311 = vmatpush.msra.mxu0 0.0
        %312 = vmatpush.msra.mxu0 0.0
        %313 = vmatpush.msra.mxu0 0.0
        %314 = vmatpush.msra.mxu0 0.0
        %315 = vmatpush.msra.mxu0 0.0
        %316 = vmatpush.msra.mxu0 0.0
        %317 = vmatpush.msra.mxu0 0.0
        %318 = vmatpush.msra.mxu0 0.0
        %319 = vmatpush.msra.mxu0 0.0
        %320 = vmatpush.msra.mxu0 0.0
        %321 = vmatpush.msra.mxu0 0.0
        %322 = vmatpush.msra.mxu0 0.03125
        %323 = vmatpush.msra.mxu0 0.03125
        %324 = vmatpush.msra.mxu0 0.03125
        %325 = vmatpush.msra.mxu0 0.03125
        %326 = vmatmul.f32.gmra.mxu0 %v299
        %v327 = vpop.f32.mrf.mxu0
        %v328 = vadd.f32 0.0, %v327
        %329 = vmatmul.f32.gmra.mxu0 %v302
        %v330 = vpop.f32.mrf.mxu0
        %v331 = vadd.f32 0.0, %v330
        %332 = vmatmul.f32.gmra.mxu0 %v305
        %v333 = vpop.f32.mrf.mxu0
        %v334 = vadd.f32 0.0, %v333
        %335 = vmatmul.f32.gmra.mxu0 %v308
        %v336 = vpop.f32.mrf.mxu0
        %v337 = vadd.f32 0.0, %v336
        %338 = vdwg.mxu0
        %v339 = vmul.f32 %v287, %v287
        %v340 = vmul.f32 %v290, %v290
        %v341 = vmul.f32 %v293, %v293
        %v342 = vmul.f32 %v296, %v296
        %v344 = vsel %vm256, %v339, 0
        %v347 = vsel %vm256, %v340, 0
        %v350 = vsel %vm256, %v341, 0
        %v353 = vsel %vm256, %v342, 0
        %355 = vmatpush.msra.mxu0 0.0
        %356 = vmatpush.msra.mxu0 0.0
        %357 = vmatpush.msra.mxu0 0.0
        %358 = vmatpush.msra.mxu0 0.0
        %359 = vmatpush.msra.mxu0 0.0
        %360 = vmatpush.msra.mxu0 0.0
        %361 = vmatpush.msra.mxu0 0.0
        %362 = vmatpush.msra.mxu0 0.0
        %363 = vmatpush.msra.mxu0 0.0
        %364 = vmatpush.msra.mxu0 0.0
        %365 = vmatpush.msra.mxu0 0.0
        %366 = vmatpush.msra.mxu0 0.0
        %367 = vmatpush.msra.mxu0 0.03125
        %368 = vmatpush.msra.mxu0 0.03125
        %369 = vmatpush.msra.mxu0 0.03125
        %370 = vmatpush.msra.mxu0 0.03125
        %371 = vmatmul.f32.gmra.mxu0 %v344
        %v372 = vpop.f32.mrf.mxu0
        %v373 = vadd.f32 0.0, %v372
        %374 = vmatmul.f32.gmra.mxu0 %v347
        %v375 = vpop.f32.mrf.mxu0
        %v376 = vadd.f32 0.0, %v375
        %377 = vmatmul.f32.gmra.mxu0 %v350
        %v378 = vpop.f32.mrf.mxu0
        %v379 = vadd.f32 0.0, %v378
        %380 = vmatmul.f32.gmra.mxu0 %v353
        %v381 = vpop.f32.mrf.mxu0
        %v382 = vadd.f32 0.0, %v381
        %383 = vdwg.mxu0
        %v384 = vmul.f32 %v328, %v328
        %v385 = vmul.f32 %v331, %v331
        %v386 = vmul.f32 %v334, %v334
        %v387 = vmul.f32 %v337, %v337
        %v388 = vsub.f32 %v373, %v384
        %v389 = vsub.f32 %v376, %v385
        %v390 = vsub.f32 %v379, %v386
        %v391 = vsub.f32 %v382, %v387
        %v392 = vmax.f32 %v388, 0.0
        %v393 = vmax.f32 %v389, 0.0
        %v394 = vmax.f32 %v390, 0.0
        %v395 = vmax.f32 %v391, 0.0
        %397 = vset.pattern.permute.xlu0 0
        %398 = vperm.xlu0 %397, %v328
        %v399 = vpop.permute.xlu0 %398
        %402 = vset.pattern.permute.xlu0 0
        %403 = vperm.xlu0 %402, %v331
        %v404 = vpop.permute.xlu0 %403
        %407 = vset.pattern.permute.xlu0 0
        %408 = vperm.xlu0 %407, %v334
        %v409 = vpop.permute.xlu0 %408
        %412 = vset.pattern.permute.xlu0 0
        %413 = vperm.xlu0 %412, %v337
        %v414 = vpop.permute.xlu0 %413
        %v416 = vsub.f32 %v287, %v399
        %v417 = vsub.f32 %v290, %v404
        %v418 = vsub.f32 %v293, %v409
        %v419 = vsub.f32 %v296, %v414
        %v420 = vadd.f32 %v392, 1e-05
        %v421 = vadd.f32 %v393, 1e-05
        %v422 = vadd.f32 %v394, 1e-05
        %v423 = vadd.f32 %v395, 1e-05
        %v424 = vrsqrt.pop %v420
        %v425 = vmul.f32 %v424, %v420
        %v426 = vmul.f32 %v425, %v424
        %v427 = vmul.f32 0.5, %v426
        %v428 = vsub.f32 1.5, %v427
        %v429 = vmul.f32 %v424, %v428
        %vm430 = vweird.f32 %v420
        %vm431 = vweird.f32 %v424
        %vm432 = vmor %vm430, %vm431
        %v433 = vsel %vm432, %v424, %v429
        %v434 = vrsqrt.pop %v421
        %v435 = vmul.f32 %v434, %v421
        %v436 = vmul.f32 %v435, %v434
        %v437 = vmul.f32 0.5, %v436
        %v438 = vsub.f32 1.5, %v437
        %v439 = vmul.f32 %v434, %v438
        %vm440 = vweird.f32 %v421
        %vm441 = vweird.f32 %v434
        %vm442 = vmor %vm440, %vm441
        %v443 = vsel %vm442, %v434, %v439
        %v444 = vrsqrt.pop %v422
        %v445 = vmul.f32 %v444, %v422
        %v446 = vmul.f32 %v445, %v444
        %v447 = vmul.f32 0.5, %v446
        %v448 = vsub.f32 1.5, %v447
        %v449 = vmul.f32 %v444, %v448
        %vm450 = vweird.f32 %v422
        %vm451 = vweird.f32 %v444
        %vm452 = vmor %vm450, %vm451
        %v453 = vsel %vm452, %v444, %v449
        %v454 = vrsqrt.pop %v423
        %v455 = vmul.f32 %v454, %v423
        %v456 = vmul.f32 %v455, %v454
        %v457 = vmul.f32 0.5, %v456
        %v458 = vsub.f32 1.5, %v457
        %v459 = vmul.f32 %v454, %v458
        %vm460 = vweird.f32 %v423
        %vm461 = vweird.f32 %v454
        %vm462 = vmor %vm460, %vm461
        %v463 = vsel %vm462, %v454, %v459
        %465 = vset.pattern.permute.xlu0 0
        %466 = vperm.xlu0 %465, %v433
        %v467 = vpop.permute.xlu0 %466
        %470 = vset.pattern.permute.xlu0 0
        %471 = vperm.xlu0 %470, %v443
        %v472 = vpop.permute.xlu0 %471
        %475 = vset.pattern.permute.xlu0 0
        %476 = vperm.xlu0 %475, %v453
        %v477 = vpop.permute.xlu0 %476
        %480 = vset.pattern.permute.xlu0 0
        %481 = vperm.xlu0 %480, %v463
        %v482 = vpop.permute.xlu0 %481
        %v484 = vmul.f32 %v416, %v467
        %v485 = vmul.f32 %v417, %v472
        %v486 = vmul.f32 %v418, %v477
        %v487 = vmul.f32 %v419, %v482
        %v488 = vperm.slane %v250, 1
        %v489 = vmul.f32 %v484, %v488
        %v490 = vmul.f32 %v485, %v488
        %v491 = vmul.f32 %v486, %v488
        %v492 = vmul.f32 %v487, %v488
        %v493 = vperm.slane %v250, 2
        %v494 = vadd.f32 %v489, %v493
        %v495 = vadd.f32 %v490, %v493
        %v496 = vadd.f32 %v491, %v493
        %v497 = vadd.f32 %v492, %v493
        %v498 = vtanh.pop %v494
        %v499 = vtanh.pop %v495
        %v500 = vtanh.pop %v496
        %v501 = vtanh.pop %v497
        %v502 = vld [vmem:[%s2] sm:$0xff]
        %v503 = vld [vmem:[%s2 + $0x8] sm:$0xff]
        %v504 = vld [vmem:[%s2 + $0x10] sm:$0xff]
        %v505 = vld [vmem:[%s2 + $0x18] sm:$0xff]
        %v506 = vperm.slane %v250, 3
        %v508 = vsel %vm256, %v498, 0
        %v511 = vsel %vm256, %v499, 0
        %v514 = vsel %vm256, %v500, 0
        %v517 = vsel %vm256, %v501, 0
        %519 = vmatpush.msra.mxu0 0.0
        %520 = vmatpush.msra.mxu0 0.0
        %521 = vmatpush.msra.mxu0 0.0
        %522 = vmatpush.msra.mxu0 0.0
        %523 = vmatpush.msra.mxu0 0.0
        %524 = vmatpush.msra.mxu0 0.0
        %525 = vmatpush.msra.mxu0 0.0
        %526 = vmatpush.msra.mxu0 0.0
        %527 = vmatpush.msra.mxu0 0.0
        %528 = vmatpush.msra.mxu0 0.0
        %529 = vmatpush.msra.mxu0 0.0
        %530 = vmatpush.msra.mxu0 0.0
        %531 = vmatpush.msra.mxu0 %v505
        %532 = vmatpush.msra.mxu0 %v504
        %533 = vmatpush.msra.mxu0 %v503
        %534 = vmatpush.msra.mxu0 %v502
        %535 = vmatmul.f32.gmra.mxu0 %v508
        %v536 = vpop.f32.mrf.mxu0
        %v537 = vadd.f32 %v506, %v536
        %538 = vmatmul.f32.gmra.mxu0 %v511
        %v539 = vpop.f32.mrf.mxu0
        %v540 = vadd.f32 %v506, %v539
        %541 = vmatmul.f32.gmra.mxu0 %v514
        %v542 = vpop.f32.mrf.mxu0
        %v543 = vadd.f32 %v506, %v542
        %544 = vmatmul.f32.gmra.mxu0 %v517
        %v545 = vpop.f32.mrf.mxu0
        %v546 = vadd.f32 %v506, %v545
        %547 = vdwg.mxu0
        %v549 = vsel %vm256, %v537, 0
        %v552 = vsel %vm256, %v540, 0
        %v555 = vsel %vm256, %v543, 0
        %v558 = vsel %vm256, %v546, 0
        %560 = vmatpush.msra.mxu0 0.0
        %561 = vmatpush.msra.mxu0 0.0
        %562 = vmatpush.msra.mxu0 0.0
        %563 = vmatpush.msra.mxu0 0.0
        %564 = vmatpush.msra.mxu0 0.0
        %565 = vmatpush.msra.mxu0 0.0
        %566 = vmatpush.msra.mxu0 0.0
        %567 = vmatpush.msra.mxu0 0.0
        %568 = vmatpush.msra.mxu0 0.0
        %569 = vmatpush.msra.mxu0 0.0
        %570 = vmatpush.msra.mxu0 0.0
        %571 = vmatpush.msra.mxu0 0.0
        %572 = vmatpush.msra.mxu0 0.03125
        %573 = vmatpush.msra.mxu0 0.03125
        %574 = vmatpush.msra.mxu0 0.03125
        %575 = vmatpush.msra.mxu0 0.03125
        %576 = vmatmul.f32.gmra.mxu0 %v549
        %v577 = vpop.f32.mrf.mxu0
        %v578 = vadd.f32 0.0, %v577
        %579 = vmatmul.f32.gmra.mxu0 %v552
        %v580 = vpop.f32.mrf.mxu0
        %v581 = vadd.f32 0.0, %v580
        %582 = vmatmul.f32.gmra.mxu0 %v555
        %v583 = vpop.f32.mrf.mxu0
        %v584 = vadd.f32 0.0, %v583
        %585 = vmatmul.f32.gmra.mxu0 %v558
        %v586 = vpop.f32.mrf.mxu0
        %v587 = vadd.f32 0.0, %v586
        %588 = vdwg.mxu0
        %v589 = vmul.f32 %v537, %v537
        %v590 = vmul.f32 %v540, %v540
        %v591 = vmul.f32 %v543, %v543
        %v592 = vmul.f32 %v546, %v546
        %v594 = vsel %vm256, %v589, 0
        %v597 = vsel %vm256, %v590, 0
        %v600 = vsel %vm256, %v591, 0
        %v603 = vsel %vm256, %v592, 0
        %605 = vmatpush.msra.mxu0 0.0
        %606 = vmatpush.msra.mxu0 0.0
        %607 = vmatpush.msra.mxu0 0.0
        %608 = vmatpush.msra.mxu0 0.0
        %609 = vmatpush.msra.mxu0 0.0
        %610 = vmatpush.msra.mxu0 0.0
        %611 = vmatpush.msra.mxu0 0.0
        %612 = vmatpush.msra.mxu0 0.0
        %613 = vmatpush.msra.mxu0 0.0
        %614 = vmatpush.msra.mxu0 0.0
        %615 = vmatpush.msra.mxu0 0.0
        %616 = vmatpush.msra.mxu0 0.0
        %617 = vmatpush.msra.mxu0 0.03125
        %618 = vmatpush.msra.mxu0 0.03125
        %619 = vmatpush.msra.mxu0 0.03125
        %620 = vmatpush.msra.mxu0 0.03125
        %621 = vmatmul.f32.gmra.mxu0 %v594
        %v622 = vpop.f32.mrf.mxu0
        %v623 = vadd.f32 0.0, %v622
        %624 = vmatmul.f32.gmra.mxu0 %v597
        %v625 = vpop.f32.mrf.mxu0
        %v626 = vadd.f32 0.0, %v625
        %627 = vmatmul.f32.gmra.mxu0 %v600
        %v628 = vpop.f32.mrf.mxu0
        %v629 = vadd.f32 0.0, %v628
        %630 = vmatmul.f32.gmra.mxu0 %v603
        %v631 = vpop.f32.mrf.mxu0
        %v632 = vadd.f32 0.0, %v631
        %633 = vdwg.mxu0
        %v634 = vmul.f32 %v578, %v578
        %v635 = vmul.f32 %v581, %v581
        %v636 = vmul.f32 %v584, %v584
        %v637 = vmul.f32 %v587, %v587
        %v638 = vsub.f32 %v623, %v634
        %v639 = vsub.f32 %v626, %v635
        %v640 = vsub.f32 %v629, %v636
        %v641 = vsub.f32 %v632, %v637
        %v642 = vmax.f32 %v638, 0.0
        %v643 = vmax.f32 %v639, 0.0
        %v644 = vmax.f32 %v640, 0.0
        %v645 = vmax.f32 %v641, 0.0
        %647 = vset.pattern.permute.xlu0 0
        %648 = vperm.xlu0 %647, %v578
        %v649 = vpop.permute.xlu0 %648
        %652 = vset.pattern.permute.xlu0 0
        %653 = vperm.xlu0 %652, %v581
        %v654 = vpop.permute.xlu0 %653
        %657 = vset.pattern.permute.xlu0 0
        %658 = vperm.xlu0 %657, %v584
        %v659 = vpop.permute.xlu0 %658
        %662 = vset.pattern.permute.xlu0 0
        %663 = vperm.xlu0 %662, %v587
        %v664 = vpop.permute.xlu0 %663
        %v666 = vsub.f32 %v537, %v649
        %v667 = vsub.f32 %v540, %v654
        %v668 = vsub.f32 %v543, %v659
        %v669 = vsub.f32 %v546, %v664
        %v670 = vadd.f32 %v642, 1e-05
        %v671 = vadd.f32 %v643, 1e-05
        %v672 = vadd.f32 %v644, 1e-05
        %v673 = vadd.f32 %v645, 1e-05
        %v674 = vrsqrt.pop %v670
        %v675 = vmul.f32 %v674, %v670
        %v676 = vmul.f32 %v675, %v674
        %v677 = vmul.f32 0.5, %v676
        %v678 = vsub.f32 1.5, %v677
        %v679 = vmul.f32 %v674, %v678
        %vm680 = vweird.f32 %v670
        %vm681 = vweird.f32 %v674
        %vm682 = vmor %vm680, %vm681
        %v683 = vsel %vm682, %v674, %v679
        %v684 = vrsqrt.pop %v671
        %v685 = vmul.f32 %v684, %v671
        %v686 = vmul.f32 %v685, %v684
        %v687 = vmul.f32 0.5, %v686
        %v688 = vsub.f32 1.5, %v687
        %v689 = vmul.f32 %v684, %v688
        %vm690 = vweird.f32 %v671
        %vm691 = vweird.f32 %v684
        %vm692 = vmor %vm690, %vm691
        %v693 = vsel %vm692, %v684, %v689
        %v694 = vrsqrt.pop %v672
        %v695 = vmul.f32 %v694, %v672
        %v696 = vmul.f32 %v695, %v694
        %v697 = vmul.f32 0.5, %v696
        %v698 = vsub.f32 1.5, %v697
        %v699 = vmul.f32 %v694, %v698
        %vm700 = vweird.f32 %v672
        %vm701 = vweird.f32 %v694
        %vm702 = vmor %vm700, %vm701
        %v703 = vsel %vm702, %v694, %v699
        %v704 = vrsqrt.pop %v673
        %v705 = vmul.f32 %v704, %v673
        %v706 = vmul.f32 %v705, %v704
        %v707 = vmul.f32 0.5, %v706
        %v708 = vsub.f32 1.5, %v707
        %v709 = vmul.f32 %v704, %v708
        %vm710 = vweird.f32 %v673
        %vm711 = vweird.f32 %v704
        %vm712 = vmor %vm710, %vm711
        %v713 = vsel %vm712, %v704, %v709
        %715 = vset.pattern.permute.xlu0 0
        %716 = vperm.xlu0 %715, %v683
        %v717 = vpop.permute.xlu0 %716
        %720 = vset.pattern.permute.xlu0 0
        %721 = vperm.xlu0 %720, %v693
        %v722 = vpop.permute.xlu0 %721
        %725 = vset.pattern.permute.xlu0 0
        %726 = vperm.xlu0 %725, %v703
        %v727 = vpop.permute.xlu0 %726
        %730 = vset.pattern.permute.xlu0 0
        %731 = vperm.xlu0 %730, %v713
        %v732 = vpop.permute.xlu0 %731
        %v734 = vmul.f32 %v666, %v717
        %v735 = vmul.f32 %v667, %v722
        %v736 = vmul.f32 %v668, %v727
        %v737 = vmul.f32 %v669, %v732
        %v738 = vperm.slane %v250, 4
        %v739 = vmul.f32 %v734, %v738
        %v740 = vmul.f32 %v735, %v738
        %v741 = vmul.f32 %v736, %v738
        %v742 = vmul.f32 %v737, %v738
        %v743 = vperm.slane %v250, 5
        %v744 = vadd.f32 %v739, %v743
        %v745 = vadd.f32 %v740, %v743
        %v746 = vadd.f32 %v741, %v743
        %v747 = vadd.f32 %v742, %v743
        %v748 = vtanh.pop %v744
        %v749 = vtanh.pop %v745
        %v750 = vtanh.pop %v746
        %v751 = vtanh.pop %v747
        %v752 = vld [vmem:[%s3] sm:$0xff]
        %v753 = vld [vmem:[%s3 + $0x8] sm:$0xff]
        %v754 = vld [vmem:[%s3 + $0x10] sm:$0xff]
        %v755 = vld [vmem:[%s3 + $0x18] sm:$0xff]
        %v757 = vsel %vm256, %v748, 0
        %v760 = vsel %vm256, %v749, 0
        %v763 = vsel %vm256, %v750, 0
        %v766 = vsel %vm256, %v751, 0
        %768 = vmatpush.msra.mxu0 0.0
        %769 = vmatpush.msra.mxu0 0.0
        %770 = vmatpush.msra.mxu0 0.0
        %771 = vmatpush.msra.mxu0 0.0
        %772 = vmatpush.msra.mxu0 0.0
        %773 = vmatpush.msra.mxu0 0.0
        %774 = vmatpush.msra.mxu0 0.0
        %775 = vmatpush.msra.mxu0 0.0
        %776 = vmatpush.msra.mxu0 0.0
        %777 = vmatpush.msra.mxu0 0.0
        %778 = vmatpush.msra.mxu0 0.0
        %779 = vmatpush.msra.mxu0 0.0
        %780 = vmatpush.msra.mxu0 %v755
        %781 = vmatpush.msra.mxu0 %v754
        %782 = vmatpush.msra.mxu0 %v753
        %783 = vmatpush.msra.mxu0 %v752
        %784 = vmatmul.f32.gmra.mxu0 %v757
        %v785 = vpop.f32.mrf.mxu0
        %v786 = vadd.f32 0.0, %v785
        %787 = vmatmul.f32.gmra.mxu0 %v760
        %v788 = vpop.f32.mrf.mxu0
        %v789 = vadd.f32 0.0, %v788
        %790 = vmatmul.f32.gmra.mxu0 %v763
        %v791 = vpop.f32.mrf.mxu0
        %v792 = vadd.f32 0.0, %v791
        %793 = vmatmul.f32.gmra.mxu0 %v766
        %v794 = vpop.f32.mrf.mxu0
        %v795 = vadd.f32 0.0, %v794
        %796 = vdwg.mxu0
        %vm797 = vcmask 39936
        %798 = vst.msk [vmem:[%s226] sm:$0xff] %vm797, %v786
        %799 = vst.msk [vmem:[%s226 + $0x8] sm:$0xff] %vm797, %v789
        %800 = vst.msk [vmem:[%s226 + $0x10] sm:$0xff] %vm797, %v792
        %801 = vst.msk [vmem:[%s226 + $0x18] sm:$0xff] %vm797, %v795
        %s802 = sand.u32 %s134, 1
        %s803 = sand.u32 %s134, 1
        %s804 = smul.addr %s803, 32
        %s805 = scalar_lea.vmem [#allocation2], %s804
        // Predicated region
        $region41: #{steerable_policy_forward.1} parent=39 // pred_check
          %p806 = pneg %p144
        $region42: #{steerable_policy_forward.1} parent=39 // pred_check_branch
          %808 = sbr.rel (%p806) target = $region44
        $region43: #{steerable_policy_forward.1} parent=39 // pred_region
          %s809 = smul.u32 4, %s16
          %s810 = ssub.s32 7, %s809
          %p811 = scmp.lt.s32.totalorder %s810, 4
          %s812 = scalar_select %p811, %s810, 4
          %s813 = smul.u32 8, %s812
          %p814 = scmp.ne.s32.totalorder 0, %s813
          %s815 = smul.addr %s809, 8
          %s816 = scalar_lea.vmem %s5, %s815
          // Predicated region
          $region45: #{steerable_policy_forward.1} parent=43 // pred_check
            %p817 = pneg %p814
          $region46: #{steerable_policy_forward.1} parent=43 // pred_check_branch
            %819 = sbr.rel (%p817) target = $region48
          $region47: #{steerable_policy_forward.1} parent=43 // pred_region
            // Predicated region
            $region49: #{steerable_policy_forward.1} parent=47 // pred_check
              _
            $region50: #{steerable_policy_forward.1} parent=47 // pred_check_branch
              %821 = sbr.rel (0) target = $region52
            $region51: #{steerable_policy_forward.1} parent=47 // pred_region
              // Predicated region
              $region71: #{steerable_policy_forward.1} parent=51 // pred_check
                _
              $region72: #{steerable_policy_forward.1} parent=51 // pred_check_branch
                %877 = sbr.rel (0) target = $region74
              $region73: #{steerable_policy_forward.1} parent=51 // pred_region
                %s878 = sshrl.u32 %s812, 2
                // While loop
                $region75: #{steerable_policy_forward.1} parent=73 // loop_pre_header
                  _
                $region76: #{steerable_policy_forward.1} parent=73 // loop_header
                  %s880 = sphi 0, %s882
                  %p881 = scmp.ge.s32.totalorder %s880, %s878
                  %s885 = sphi 0, %s898
                  %s886 = sphi %s805, %s901
                  %s887 = sphi %s816, %s902
                $region77: #{steerable_policy_forward.1} parent=73 // loop_header_branch
                  %884 = sbr.rel (%p881) target = $region81
                $region78: #{steerable_policy_forward.1} parent=73 // loop_body
                  %v888 = vld [vmem:[%s886] sm:$0xff]
                  %889 = vst [vmem:[%s887] sm:$0xff] %v888
                  %v890 = vld [vmem:[%s886 + $0x8] sm:$0xff]
                  %891 = vst [vmem:[%s887 + $0x8] sm:$0xff] %v890
                  %v892 = vld [vmem:[%s886 + $0x10] sm:$0xff]
                  %893 = vst [vmem:[%s887 + $0x10] sm:$0xff] %v892
                  %v894 = vld [vmem:[%s886 + $0x18] sm:$0xff]
                  %895 = vst [vmem:[%s887 + $0x18] sm:$0xff] %v894
                  %s896 = sadd.s32 1, %s885
                  %p897 = scmp.ge.s32.totalorder %s896, %s878
                  %s898 = scalar_select %p897, 0, %s896
                  %s899 = smul.u32 %s898, 32
                  %s900 = smul.u32 %s898, 32
                  %s901 = scalar_lea.vmem %s805, %s899 [#allocation2]
                  %s902 = scalar_lea.vmem %s816, %s900
                $region79: #{steerable_policy_forward.1} parent=73 // loop_footer
                  %s882 = sadd.s32 %s880, 1
                $region80: #{steerable_policy_forward.1} parent=73 // loop_footer_branch
                  %879 = sbr.rel target = $region76
                $region81: #{steerable_policy_forward.1} parent=73 // loop_exit
                  _
                %s903 = sshrl.u32 %s812, 2
                %s904 = sand.u32 %s812, 3
                %s905 = smul.u32 %s903, 4
                %s906 = smul.u32 8, %s905
                %s907 = scalar_lea.vmem %s805, %s906 [#allocation2]
                %s908 = smul.u32 8, %s905
                %s909 = scalar_lea.vmem %s816, %s908
                // While loop
                $region82: #{steerable_policy_forward.1} parent=73 // loop_pre_header
                  _
                $region83: #{steerable_policy_forward.1} parent=73 // loop_header
                  %s911 = sphi 0, %s913
                  %p912 = scmp.ge.s32.totalorder %s911, %s904
                  %s916 = sphi 0, %s923
                  %s917 = sphi %s907, %s926
                  %s918 = sphi %s909, %s927
                $region84: #{steerable_policy_forward.1} parent=73 // loop_header_branch
                  %915 = sbr.rel (%p912) target = $region88
                $region85: #{steerable_policy_forward.1} parent=73 // loop_body
                  %v919 = vld [vmem:[%s917] sm:$0xff]
                  %920 = vst [vmem:[%s918] sm:$0xff] %v919
                  %s921 = sadd.s32 1, %s916
                  %p922 = scmp.ge.s32.totalorder %s921, %s904
                  %s923 = scalar_select %p922, 0, %s921
                  %s924 = smul.u32 %s923, 8
                  %s925 = smul.u32 %s923, 8
                  %s926 = scalar_lea.vmem %s907, %s924 [#allocation2]
                  %s927 = scalar_lea.vmem %s909, %s925
                $region86: #{steerable_policy_forward.1} parent=73 // loop_footer
                  %s913 = sadd.s32 %s911, 1
                $region87: #{steerable_policy_forward.1} parent=73 // loop_footer_branch
                  %910 = sbr.rel target = $region83
                $region88: #{steerable_policy_forward.1} parent=73 // loop_exit
                  _
              $region74: #{steerable_policy_forward.1} parent=51 // pred_fallthru
                _
              // Predicated region
              $region89: #{steerable_policy_forward.1} parent=51 // pred_check
                _
              $region90: #{steerable_policy_forward.1} parent=51 // pred_check_branch
                %929 = sbr.rel target = $region92
              $region91: #{steerable_policy_forward.1} parent=51 // pred_region
                _
              $region92: #{steerable_policy_forward.1} parent=51 // pred_fallthru
                _
            $region52: #{steerable_policy_forward.1} parent=47 // pred_fallthru
              _
            // Predicated region
            $region53: #{steerable_policy_forward.1} parent=47 // pred_check
              _
            $region54: #{steerable_policy_forward.1} parent=47 // pred_check_branch
              %823 = sbr.rel target = $region56
            $region55: #{steerable_policy_forward.1} parent=47 // pred_region
              %s825 = ssub.s32 256, 1
              %s826 = sshrl.u32 %s812, 2
              // While loop
              $region57: #{steerable_policy_forward.1} parent=55 // loop_pre_header
                _
              $region58: #{steerable_policy_forward.1} parent=55 // loop_header
                %s828 = sphi 0, %s830
                %p829 = scmp.ge.s32.totalorder %s828, %s826
                %s833 = sphi 0, %s846
                %s834 = sphi %s805, %s849
                %s835 = sphi %s816, %s850
              $region59: #{steerable_policy_forward.1} parent=55 // loop_header_branch
                %832 = sbr.rel (%p829) target = $region63
              $region60: #{steerable_policy_forward.1} parent=55 // loop_body
                %v836 = vld [vmem:[%s834] sm:%s825]
                %837 = vst [vmem:[%s835] sm:%s825] %v836
                %v838 = vld [vmem:[%s834 + $0x8] sm:%s825]
                %839 = vst [vmem:[%s835 + $0x8] sm:%s825] %v838
                %v840 = vld [vmem:[%s834 + $0x10] sm:%s825]
                %841 = vst [vmem:[%s835 + $0x10] sm:%s825] %v840
                %v842 = vld [vmem:[%s834 + $0x18] sm:%s825]
                %843 = vst [vmem:[%s835 + $0x18] sm:%s825] %v842
                %s844 = sadd.s32 1, %s833
                %p845 = scmp.ge.s32.totalorder %s844, %s826
                %s846 = scalar_select %p845, 0, %s844
                %s847 = smul.u32 %s846, 32
                %s848 = smul.u32 %s846, 32
                %s849 = scalar_lea.vmem %s805, %s847 [#allocation2]
                %s850 = scalar_lea.vmem %s816, %s848
              $region61: #{steerable_policy_forward.1} parent=55 // loop_footer
                %s830 = sadd.s32 %s828, 1
              $region62: #{steerable_policy_forward.1} parent=55 // loop_footer_branch
                %827 = sbr.rel target = $region58
              $region63: #{steerable_policy_forward.1} parent=55 // loop_exit
                _
              %s851 = sshrl.u32 %s812, 2
              %s852 = sand.u32 %s812, 3
              %s853 = smul.u32 %s851, 4
              %s854 = smul.u32 8, %s853
              %s855 = scalar_lea.vmem %s805, %s854 [#allocation2]
              %s856 = smul.u32 8, %s853
              %s857 = scalar_lea.vmem %s816, %s856
              // While loop
              $region64: #{steerable_policy_forward.1} parent=55 // loop_pre_header
                _
              $region65: #{steerable_policy_forward.1} parent=55 // loop_header
                %s859 = sphi 0, %s861
                %p860 = scmp.ge.s32.totalorder %s859, %s852
                %s864 = sphi 0, %s871
                %s865 = sphi %s855, %s874
                %s866 = sphi %s857, %s875
              $region66: #{steerable_policy_forward.1} parent=55 // loop_header_branch
                %863 = sbr.rel (%p860) target = $region70
              $region67: #{steerable_policy_forward.1} parent=55 // loop_body
                %v867 = vld [vmem:[%s865] sm:%s825]
                %868 = vst [vmem:[%s866] sm:%s825] %v867
                %s869 = sadd.s32 1, %s864
                %p870 = scmp.ge.s32.totalorder %s869, %s852
                %s871 = scalar_select %p870, 0, %s869
                %s872 = smul.u32 %s871, 8
                %s873 = smul.u32 %s871, 8
                %s874 = scalar_lea.vmem %s855, %s872 [#allocation2]
                %s875 = scalar_lea.vmem %s857, %s873
              $region68: #{steerable_policy_forward.1} parent=55 // loop_footer
                %s861 = sadd.s32 %s859, 1
              $region69: #{steerable_policy_forward.1} parent=55 // loop_footer_branch
                %858 = sbr.rel target = $region65
              $region70: #{steerable_policy_forward.1} parent=55 // loop_exit
                _
            $region56: #{steerable_policy_forward.1} parent=47 // pred_fallthru
              _
          $region48: #{steerable_policy_forward.1} parent=43 // pred_fallthru
            _
          %930 = vnop
        $region44: #{steerable_policy_forward.1} parent=39 // pred_fallthru
          _
      $region40: #{steerable_policy_forward.1} parent=5 // pred_fallthru
        _
      %p931 = scmp.le.s32.totalorder 2, %s11
      // Predicated region
      $region93: #{steerable_policy_forward.1} parent=5 // pred_check
        %p932 = pneg %p931
      $region94: #{steerable_policy_forward.1} parent=5 // pred_check_branch
        %934 = sbr.rel (%p932) target = $region96
      $region95: #{steerable_policy_forward.1} parent=5 // pred_region
        %s935 = ssub.s32 %s11, 2
        // Predicated region
        $region97: #{steerable_policy_forward.1} parent=95 // pred_check
          %p936 = pneg %p150
        $region98: #{steerable_policy_forward.1} parent=95 // pred_check_branch
          %938 = sbr.rel (%p936) target = $region100
        $region99: #{steerable_policy_forward.1} parent=95 // pred_region
          %s939 = sand.u32 %s135, 1
          %s940 = sand.u32 %s135, 1
          %s941 = smul.addr %s940, 32
          %s942 = scalar_lea.vmem [#allocation2], %s941
        $region100: #{steerable_policy_forward.1} parent=95 // pred_fallthru
          _
      $region96: #{steerable_policy_forward.1} parent=5 // pred_fallthru
        _
    $region6: #{steerable_policy_forward.1} parent=1 // loop_footer
      %s15 = sadd.s32 1, %s11
    $region7: #{steerable_policy_forward.1} parent=1 // loop_footer_branch
      %10 = sbr.rel target = $region3
    $region8: #{steerable_policy_forward.1} parent=1 // loop_exit
      _

</llo_original>
